<compile_context>
chip_gen: v6e
topology: v6e:2x2x1
jax: 0.10.0
libtpu: 0.0.40
codegen_flags: <defaults>
</compile_context>

<pallas_src>
import math
import jax
import jax.numpy as jnp
from jax.experimental import pallas as pl
from jax.experimental.pallas import tpu as pltpu


def _round_up(x, m):
    return (x + m - 1) // m * m


def _sublane(dtype):
    # Minimum second-to-last-dim granularity: 8 for 4-byte, 16 for 2-byte, ...
    itemsize = jnp.dtype(dtype).itemsize
    return max(8, 32 // itemsize)


def _choose_tile_m(batch, sublane, cap):
    if batch <= sublane:
        # Single full-extent block; "equals full array dim" satisfies the tiling rule.
        return batch
    # Aim for >= 2 grid steps so the "parallel" M axis can shard across the two
    # TensorCores on v7x; cap keeps per-step tiles comfortably sized.
    half = _round_up((batch + 1) // 2, sublane)
    return min(cap, half)


def prepare_var_params(weight, bias, compute_dtype=None):
    """One-time parameter prep (do at model init, NOT per forward call).

    weight: torch layout (out_features, in_features)
    bias:   (out_features,)
    Returns:
      w_t: (in_features, out_features)  pre-transposed (no padding needed)
      b2:  (1, out_features)
    """
    w_t = jnp.asarray(weight).T  # one-time transpose, outside the hot path
    b2 = jnp.asarray(bias).reshape(1, -1)
    if compute_dtype is not None:
        w_t = w_t.astype(compute_dtype)
    return w_t, b2


def _var_kernel(x_ref, w_ref, b_ref, o_ref):
    # MXU matmul with f32 accumulation + VPU bias add. Weight/bias tiles are
    # VMEM-resident (constant index_map); only x/out tiles march over M.
    acc = jnp.dot(x_ref[...], w_ref[...], preferred_element_type=jnp.float32)
    o_ref[...] = (acc + b_ref[...]).astype(o_ref.dtype)


def var_forward(x, w_t, b2, *, steps_ahead, d_out, tile_m_cap=1024,
                compute_dtype=None, xla_fallback_below=0):
    """x: (b, order, d_in). w_t/b2 from prepare_var_params.
    Returns (b, steps_ahead, d_out)."""
    batch = x.shape[0]
    in_features = x.shape[1] * x.shape[2]          # order * d_in
    out_features = steps_ahead * d_out
    assert w_t.shape == (in_features, out_features)
    out_dtype = x.dtype

    x_flat = x.reshape(batch, in_features)         # 'b s f -> b (s f)'
    if compute_dtype is not None:
        x_flat = x_flat.astype(compute_dtype)
        w_t = w_t.astype(compute_dtype)

    if batch < xla_fallback_below:
        # Tiny batch: a single fused XLA dot+bias is at/below Pallas launch floor.
        out = (jnp.dot(x_flat, w_t, preferred_element_type=jnp.float32)
               + b2).astype(out_dtype)
        return out.reshape(batch, steps_ahead, d_out)

    sublane = _sublane(x_flat.dtype)
    tile_m = _choose_tile_m(batch, sublane, tile_m_cap)
    grid_m = pl.cdiv(batch, tile_m)

    itemsize_in = jnp.dtype(x_flat.dtype).itemsize
    itemsize_out = jnp.dtype(out_dtype).itemsize
    cost = pl.CostEstimate(
        flops=2 * batch * in_features * out_features,
        transcendentals=0,
        bytes_accessed=(itemsize_in * (batch * in_features          # x
                                       + in_features * out_features)  # weight
                        + jnp.dtype(b2.dtype).itemsize * out_features  # bias
                        + itemsize_out * batch * out_features),       # output
    )

    out_flat = pl.pallas_call(
        _var_kernel,
        out_shape=jax.ShapeDtypeStruct((batch, out_features), out_dtype),
        grid=(grid_m,),
        in_specs=[
            # x tile marches over M; Pallas clips the ragged last block.
            pl.BlockSpec((tile_m, in_features), lambda i: (i, 0)),
            # weight/bias: constant index_map -> DMA'd once, VMEM-resident.
            pl.BlockSpec((in_features, out_features), lambda i: (0, 0)),
            pl.BlockSpec((1, out_features), lambda i: (0, 0)),
        ],
        out_specs=pl.BlockSpec((tile_m, out_features), lambda i: (i, 0)),
        compiler_params=pltpu.CompilerParams(
            dimension_semantics=("parallel",)),     # shard M over TCs (v7x)
        cost_estimate=cost,
    )(x_flat, w_t, b2)

    return out_flat.reshape(batch, steps_ahead, d_out)  # 'b (s f) -> b s f'


if __name__ == "__main__":
    # Small shapes consistent with the module.
    order = 8          # s
    d_in = 4           # f
    d_out = 4
    steps_ahead = 2
    batch = 2

    in_features = order * d_in
    out_features = steps_ahead * d_out

    key = jax.random.PRNGKey(0)
    kx, kw, kb = jax.random.split(key, 3)

    # Deterministic params (PyTorch nn.Linear default: U(-1/sqrt(in), 1/sqrt(in))).
    bound = 1.0 / math.sqrt(in_features)
    weight = jax.random.uniform(kw, (out_features, in_features),
                                minval=-bound, maxval=bound, dtype=jnp.float32)
    bias = jax.random.uniform(kb, (out_features,),
                              minval=-bound, maxval=bound, dtype=jnp.float32)

    x = jax.random.normal(kx, (batch, order, d_in), dtype=jnp.float32)

    # One-time parameter prep (transpose), outside the hot path.
    w_t, b2 = prepare_var_params(weight, bias)

    out = var_forward(x, w_t, b2, steps_ahead=steps_ahead, d_out=d_out)
    out = jax.block_until_ready(out)

    # Reference check in plain JAX (same math as torch.nn.Linear).
    ref = (x.reshape(batch, in_features) @ weight.T + bias).reshape(
        batch, steps_ahead, d_out)
    assert out.shape == (batch, steps_ahead, d_out)
    assert jnp.allclose(out, ref, atol=1e-5, rtol=1e-5)

    # Larger, non-multiple-of-tile batch: exercises grid_m >= 2 (both v7x TCs)
    # and the ragged last M block (no host-side padding or slicing).
    big_batch = 300
    xb = jax.random.normal(jax.random.PRNGKey(1), (big_batch, order, d_in),
                           dtype=jnp.float32)
    out_b = var_forward(xb, w_t, b2, steps_ahead=steps_ahead, d_out=d_out)
    out_b = jax.block_until_ready(out_b)
    ref_b = (xb.reshape(big_batch, in_features) @ weight.T + bias).reshape(
        big_batch, steps_ahead, d_out)
    assert out_b.shape == (big_batch, steps_ahead, d_out)
    assert jnp.allclose(out_b, ref_b, atol=1e-5, rtol=1e-5)

    print("KERNEL_OK")
</pallas_src>

<mosaic_0001>
module attributes {stable_mosaic.version = 11 : i64} {
  func.func @_var_kernel(%arg0: i32, %arg1: memref<2x32xf32, #tpu.memory_space<vmem>>, %arg2: memref<32x8xf32, #tpu.memory_space<vmem>>, %arg3: memref<1x8xf32, #tpu.memory_space<vmem>>, %arg4: memref<2x8xf32, #tpu.memory_space<vmem>>) attributes {dimension_semantics = [#tpu.dimension_semantics<parallel>], iteration_bounds = array<i64: 1>, scalar_prefetch = 0 : i64, scratch_operands = 0 : i64, tpu.core_type = #tpu.core_type<tc>, window_params = [{transform_indices = @transform_0, window_bounds = array<i64: 2, 32>}, {pipeline_mode = #tpu.pipeline_mode<synchronous>, transform_indices = @transform_1, window_bounds = array<i64: 32, 8>}, {pipeline_mode = #tpu.pipeline_mode<synchronous>, transform_indices = @transform_2, window_bounds = array<i64: 1, 8>}, {transform_indices = @transform_3, window_bounds = array<i64: 2, 8>}]} {
    %c0 = arith.constant 0 : index
    %c0_0 = arith.constant 0 : index
    %0 = vector.load %arg1[%c0, %c0_0] : memref<2x32xf32, #tpu.memory_space<vmem>>, vector<2x32xf32>
    %c0_1 = arith.constant 0 : index
    %c0_2 = arith.constant 0 : index
    %1 = vector.load %arg2[%c0_1, %c0_2] : memref<32x8xf32, #tpu.memory_space<vmem>>, vector<32x8xf32>
    %cst = arith.constant dense<0.000000e+00> : vector<2x8xf32>
    %2 = tpu.matmul %0, %1, %cst {dimension_numbers = #tpu.dot_dimension_numbers<[1], [0], [0], [1], [0, 0, 1, 1], [], []>} : vector<2x32xf32>, vector<32x8xf32>, vector<2x8xf32> -> vector<2x8xf32>
    %c0_3 = arith.constant 0 : index
    %c0_4 = arith.constant 0 : index
    %3 = vector.load %arg3[%c0_3, %c0_4] : memref<1x8xf32, #tpu.memory_space<vmem>>, vector<1x8xf32>
    %4 = vector.broadcast %3 : vector<1x8xf32> to vector<2x8xf32>
    %5 = arith.addf %2, %4 : vector<2x8xf32>
    %c0_5 = arith.constant 0 : index
    %c0_6 = arith.constant 0 : index
    %6 = vector.load %arg4[%c0_5, %c0_6] : memref<2x8xf32, #tpu.memory_space<vmem>>, vector<2x8xf32>
    tpu.vector_store %arg4[%c0_5, %c0_6], %5 {strides = array<i32>} : memref<2x8xf32, #tpu.memory_space<vmem>>, vector<2x8xf32>,
    return
  }
  func.func @transform_0(%arg0: i32) -> (i32, i32) {
    %c0_i32 = arith.constant 0 : i32
    %c0_i32_0 = arith.constant 0 : i32
    return %arg0, %c0_i32 : i32, i32
  }
  func.func @transform_1(%arg0: i32) -> (i32, i32) {
    %c0_i32 = arith.constant 0 : i32
    %c0_i32_0 = arith.constant 0 : i32
    %c0_i32_1 = arith.constant 0 : i32
    return %c0_i32, %c0_i32_0 : i32, i32
  }
  func.func @transform_2(%arg0: i32) -> (i32, i32) {
    %c0_i32 = arith.constant 0 : i32
    %c0_i32_0 = arith.constant 0 : i32
    %c0_i32_1 = arith.constant 0 : i32
    return %c0_i32, %c0_i32_0 : i32, i32
  }
  func.func @transform_3(%arg0: i32) -> (i32, i32) {
    %c0_i32 = arith.constant 0 : i32
    %c0_i32_0 = arith.constant 0 : i32
    return %arg0, %c0_i32 : i32, i32
  }
}

</mosaic_0001>

<llo_original>
// kernel: tpu_custom_call.1
$region0: #{tpu_custom_call.1}
  #allocation0 [shape = 'u32[]', space=smem, size = 0x4, offset = 0x4, fixed_abs, tag = 'smem constant byte address 0x4 - core index']
  #allocation1 [shape = 'u32[144,128]{1,0:T(1,128)}', space=vmem, size = 0x12000, scoped, tag = 'internal scratch']
  %s0 = inlined_call_operand.vmem [shape: f32[2,32], index: 0, kind: input, shape index: {}]
  %s1 = inlined_call_operand.vmem [shape: f32[32,8], index: 1, kind: input, shape index: {}]
  %s2 = inlined_call_operand.vmem [shape: f32[1,8], index: 2, kind: input, shape index: {}]
  %s3 = inlined_call_operand.hbm [shape: f32[2,8], index: 3, kind: output, shape index: {}]
  %s4 = sld [smem:[#allocation0]]
  $region22: #{tpu_custom_call.1} parent=0
    _
  %s6 = ssub.s32 1, %s4
  %s7 = scalar_select 0, %s6, %s4
  $region1: #{tpu_custom_call.1} parent=0
    #allocation2 [shape = 'u8[1024]{0}', space=vmem, size = 0x400, scoped, tag = 'output window, operand 0, single buffered']
    #allocation3 [shape = 's32[1]{0}', space=sflag, size = 0x4, scoped, tag = 'scoped memory for tpu_custom_call.1']
    %8 = vsyncpa [#allocation3], 0
    // Predicated region
    $region2: #{tpu_custom_call.1} parent=1 // pred_check
      _
    $region3: #{tpu_custom_call.1} parent=1 // pred_check_branch
      %10 = sbr.rel (0) target = $region5
    $region4: #{tpu_custom_call.1} parent=1 // pred_region
      _
    $region5: #{tpu_custom_call.1} parent=1 // pred_fallthru
      _
    // Predicated region
    $region6: #{tpu_custom_call.1} parent=1 // pred_check
      _
    $region7: #{tpu_custom_call.1} parent=1 // pred_check_branch
      %12 = sbr.rel (0) target = $region9
    $region8: #{tpu_custom_call.1} parent=1 // pred_region
      _
    $region9: #{tpu_custom_call.1} parent=1 // pred_fallthru
      _
    // Predicated region
    $region10: #{tpu_custom_call.1} parent=1 // pred_check
      _
    $region11: #{tpu_custom_call.1} parent=1 // pred_check_branch
      %14 = sbr.rel (0) target = $region13
    $region12: #{tpu_custom_call.1} parent=1 // pred_region
      _
    $region13: #{tpu_custom_call.1} parent=1 // pred_fallthru
      _
    %v15 = vld [vmem:[%s0] sm:$0x3]
    %v16 = vld [vmem:[%s1] sm:$0xff]
    %v17 = vld [vmem:[%s1 + $0x8] sm:$0xff]
    %v18 = vld [vmem:[%s1 + $0x10] sm:$0xff]
    %v19 = vld [vmem:[%s1 + $0x18] sm:$0xff]
    %v20 = vld [vmem:[%s2] sm:$0x1]
    %v22 = vlaneseq
    %v23 = vshrl.u32 %v22, 7
    %v24 = vsub.s32 0, %v23
    %v25 = vrot.slane %v20, %v24
    %vm27 = vcmask 261120
    %v29 = vsel %vm27, %v15, 0
    %31 = vmatprep.subr.mxu0 0.0
    %32 = vmatpush1.msra.mxu0 0.0
    %33 = vmatprep.subr.mxu0 0.0
    %34 = vmatpush1.msra.mxu0 0.0
    %35 = vmatprep.subr.mxu0 0.0
    %36 = vmatpush1.msra.mxu0 0.0
    %37 = vmatprep.subr.mxu0 0.0
    %38 = vmatpush1.msra.mxu0 0.0
    %39 = vmatprep.subr.mxu0 0.0
    %40 = vmatpush1.msra.mxu0 0.0
    %41 = vmatprep.subr.mxu0 0.0
    %42 = vmatpush1.msra.mxu0 0.0
    %43 = vmatprep.subr.mxu0 0.0
    %44 = vmatpush1.msra.mxu0 0.0
    %45 = vmatprep.subr.mxu0 0.0
    %46 = vmatpush1.msra.mxu0 0.0
    %47 = vmatprep.subr.mxu0 0.0
    %48 = vmatpush1.msra.mxu0 0.0
    %49 = vmatprep.subr.mxu0 0.0
    %50 = vmatpush1.msra.mxu0 0.0
    %51 = vmatprep.subr.mxu0 0.0
    %52 = vmatpush1.msra.mxu0 0.0
    %53 = vmatprep.subr.mxu0 0.0
    %54 = vmatpush1.msra.mxu0 0.0
    %55 = vmatprep.subr.mxu0 0.0
    %56 = vmatpush1.msra.mxu0 %v19
    %57 = vmatprep.subr.mxu0 0.0
    %58 = vmatpush1.msra.mxu0 %v18
    %59 = vmatprep.subr.mxu0 0.0
    %60 = vmatpush1.msra.mxu0 %v17
    %61 = vmatprep.subr.mxu0 0.0
    %62 = vmatpush1.msra.mxu0 %v16
    %63 = vmatprep.subr.mxu0 0.0
    %64 = vmatpush2.msra.mxu0 0.0
    %65 = vmatprep.subr.mxu0 0.0
    %66 = vmatpush2.msra.mxu0 0.0
    %67 = vmatprep.subr.mxu0 0.0
    %68 = vmatpush2.msra.mxu0 0.0
    %69 = vmatprep.subr.mxu0 0.0
    %70 = vmatpush2.msra.mxu0 0.0
    %71 = vmatprep.subr.mxu0 0.0
    %72 = vmatpush2.msra.mxu0 0.0
    %73 = vmatprep.subr.mxu0 0.0
    %74 = vmatpush2.msra.mxu0 0.0
    %75 = vmatprep.subr.mxu0 0.0
    %76 = vmatpush2.msra.mxu0 0.0
    %77 = vmatprep.subr.mxu0 0.0
    %78 = vmatpush2.msra.mxu0 0.0
    %79 = vmatprep.subr.mxu0 0.0
    %80 = vmatpush2.msra.mxu0 0.0
    %81 = vmatprep.subr.mxu0 0.0
    %82 = vmatpush2.msra.mxu0 0.0
    %83 = vmatprep.subr.mxu0 0.0
    %84 = vmatpush2.msra.mxu0 0.0
    %85 = vmatprep.subr.mxu0 0.0
    %86 = vmatpush2.msra.mxu0 0.0
    %87 = vmatprep.subr.mxu0 0.0
    %88 = vmatpush2.msra.mxu0 0.0
    %89 = vmatprep.subr.mxu0 0.0
    %90 = vmatpush2.msra.mxu0 0.0
    %91 = vmatprep.subr.mxu0 0.0
    %92 = vmatpush2.msra.mxu0 0.0
    %93 = vmatprep.subr.mxu0 0.0
    %94 = vmatpush2.msra.mxu0 0.0
    %95 = vmatprep.mubr.f32.mxu0 0.0
    %96 = vmatmul.mubr.f32.gmra.mxu0 %v29
    %v97 = vpop.f32.mrf.mxu0
    %v98 = vadd.f32 %v25, %v97
    %v99 = vpop.f32.mrf.mxu0
    %100 = vdwg.mxu0
    %vm101 = vcmask 58368
    %102 = vst.msk [vmem:[#allocation2] sm:$0x3] %vm101, %v98
    // Predicated region
    $region14: #{tpu_custom_call.1} parent=1 // pred_check
      _
    $region15: #{tpu_custom_call.1} parent=1 // pred_check_branch
      %104 = sbr.rel (0) target = $region17
    $region16: #{tpu_custom_call.1} parent=1 // pred_region
      %s106 = ssub.s32 32, 32
      %107 = vsyncadd [#allocation3], %s106
      %s109 = sshll.u32 [#allocation2], 4
      %s110 = int_to_ptr.vmem [resolvable:$true] %s109
      %112 = dma.vmem_to_hbm [thread:$0]  %s110, 32, %s3, [#allocation3]
    $region17: #{tpu_custom_call.1} parent=1 // pred_fallthru
      _
    // Predicated region
    $region18: #{tpu_custom_call.1} parent=1 // pred_check
      _
    $region19: #{tpu_custom_call.1} parent=1 // pred_check_branch
      %114 = sbr.rel (0) target = $region21
    $region20: #{tpu_custom_call.1} parent=1 // pred_region
      %115 = dma.done [#allocation3], 32
    $region21: #{tpu_custom_call.1} parent=1 // pred_fallthru
      _
    %116 = vsyncpa [#allocation3], 1

</llo_original>
